<compile_context>
chip_gen: v5e
topology: v5e:2x2
jax: 0.10.0
libtpu: 0.0.40
codegen_flags: <defaults>
</compile_context>

<pallas_src>
import jax
import jax.numpy as jnp
from jax import lax
from jax.experimental import pallas as pl
from jax.experimental.pallas import tpu as pltpu

_CHUNK = 512                # inner compute chunk (lanes): keeps activations in vregs
_MAX_CHUNKS_PER_TILE = 16   # -> max batch tile TB = 8192 lanes per grid step


def _round_up(n, m):
    return ((n + m - 1) // m) * m


def _encoder_kernel(x_ref, w1_ref, b1_ref, w2_ref, b2_ref, w3_ref, b3_ref,
                    o_ref):
    """x_ref: (TB, 6) natural layout; o_ref: (2, TB) lane-dense output."""
    # Weights/biases are tiny and VMEM-resident; load + broadcast ONCE per
    # grid step (hoisted out of the chunk loop -- JAX does not CSE broadcasts).
    w1 = w1_ref[...]                                    # (8, 6)
    w2 = w2_ref[...]                                    # (8, 8)
    w3 = w3_ref[...]                                    # (2, 8)
    b1 = jnp.broadcast_to(b1_ref[...], (8, _CHUNK))
    b2 = jnp.broadcast_to(b2_ref[...], (8, _CHUNK))
    b3 = jnp.broadcast_to(b3_ref[...], (2, _CHUNK))

    n_chunks = x_ref.shape[0] // _CHUNK                 # static (TB % 512 == 0)

    def chunk_body(c, carry):
        start = pl.multiple_of(c * _CHUNK, _CHUNK)
        xc = x_ref[pl.ds(start, _CHUNK), :]             # (C, 6)
        # Layer 1 on the MXU: contract the feature axes ((8,6) x (C,6)^T
        # -> (8,C)); batch stays on the lane axis (lane-dense).
        z = lax.dot_general(w1, xc, (((1,), (1,)), ((), ())),
                            preferred_element_type=jnp.float32)
        z = jnp.maximum(z + b1, 0.0)
        z = jnp.maximum(
            jnp.dot(w2, z, preferred_element_type=jnp.float32) + b2, 0.0)
        z = jnp.maximum(
            jnp.dot(w3, z, preferred_element_type=jnp.float32) + b3, 0.0)
        o_ref[:, pl.ds(start, _CHUNK)] = z.astype(o_ref.dtype)
        return carry

    lax.fori_loop(0, n_chunks, chunk_body, 0, unroll=True)


def encoder_forward(x, params):
    """x: (B, 6) float. params: torch-layout (out, in) weights. -> (B, 2)."""
    w1, b1 = params["w1"], params["b1"]   # (8, 6), (8,)
    w2, b2 = params["w2"], params["b2"]   # (8, 8), (8,)
    w3, b3 = params["w3"], params["b3"]   # (2, 8), (2,)

    B = x.shape[0]
    # Batch tile selection: TB = chunks_per_tile * 512, capped at 8192 lanes,
    # and chosen so the grid has >= 2 steps whenever B > 512 (v7x dual-TC).
    n_units = max(1, -(-B // _CHUNK))
    chunks_per_tile = min(_MAX_CHUNKS_PER_TILE, max(1, (n_units + 1) // 2))
    TB = chunks_per_tile * _CHUNK
    B_pad = _round_up(B, TB)
    grid = (B_pad // TB,)

    xf = x.astype(jnp.float32)
    if B_pad != B:
        # Extra HBM pass only when B is not already tile-aligned; padded rows
        # produce relu(b) garbage that is sliced off below.
        xf = jnp.pad(xf, ((0, B_pad - B), (0, 0)))

    b1c = b1.reshape(8, 1).astype(jnp.float32)
    b2c = b2.reshape(8, 1).astype(jnp.float32)
    b3c = b3.reshape(2, 1).astype(jnp.float32)

    const = lambda i: (0, 0)   # weights/biases: same whole-array block every step
    out = pl.pallas_call(
        _encoder_kernel,
        out_shape=jax.ShapeDtypeStruct((2, B_pad), jnp.float32),
        grid=grid,
        in_specs=[
            pl.BlockSpec((TB, 6), lambda i: (i, 0)),   # x tile, natural layout
            pl.BlockSpec((8, 6), const),               # w1
            pl.BlockSpec((8, 1), const),               # b1
            pl.BlockSpec((8, 8), const),               # w2
            pl.BlockSpec((8, 1), const),               # b2
            pl.BlockSpec((2, 8), const),               # w3 (l14)
            pl.BlockSpec((2, 1), const),               # b3 (l14)
        ],
        out_specs=pl.BlockSpec((2, TB), lambda i: (0, i)),  # lane-dense output
        compiler_params=pltpu.CompilerParams(
            dimension_semantics=("parallel",),  # shards batch tiles across v7x TCs
            vmem_limit_bytes=32 * 1024 * 1024),
    )(xf, w1.astype(jnp.float32), b1c, w2.astype(jnp.float32), b2c,
      w3.astype(jnp.float32), b3c)

    # Tiny (2, B) -> (B, 2) fix-up; keeps the kernel's stores lane-dense.
    return out[:, :B].T


def init_params(key):
    """Deterministic init matching torch Linear shapes (out_features, in_features)."""
    k1, k2, k3, k4, k5, k6 = jax.random.split(key, 6)
    return {
        "w1": jax.random.normal(k1, (8, 6), jnp.float32) * 0.3,
        "b1": jax.random.normal(k2, (8,), jnp.float32) * 0.1,
        "w2": jax.random.normal(k3, (8, 8), jnp.float32) * 0.3,
        "b2": jax.random.normal(k4, (8,), jnp.float32) * 0.1,
        "w3": jax.random.normal(k5, (2, 8), jnp.float32) * 0.3,
        "b3": jax.random.normal(k6, (2,), jnp.float32) * 0.1,
    }


def _reference_forward(x, p):
    z = jnp.maximum(x @ p["w1"].T + p["b1"], 0.0)
    z = jnp.maximum(z @ p["w2"].T + p["b2"], 0.0)
    return jnp.maximum(z @ p["w3"].T + p["b3"], 0.0)


if __name__ == "__main__":
    key = jax.random.PRNGKey(0)
    kx, kp = jax.random.split(key)
    # B=1200 exercises padding, a 2-step grid (TB=1024) and a 2-chunk inner loop.
    B = 1200
    x = jax.random.normal(kx, (B, 6), jnp.float32)
    params = init_params(kp)

    out = jax.block_until_ready(encoder_forward(x, params))
    ref = _reference_forward(x, params)

    assert out.shape == (B, 2), out.shape
    assert jnp.allclose(out, ref, atol=1e-5, rtol=1e-5), "mismatch vs reference"
    print("KERNEL_OK")
</pallas_src>

<mosaic_0001>
module attributes {stable_mosaic.version = 11 : i64} {
  func.func @_encoder_kernel(%arg0: i32, %arg1: memref<1024x6xf32, #tpu.memory_space<vmem>>, %arg2: memref<8x6xf32, #tpu.memory_space<vmem>>, %arg3: memref<8x1xf32, #tpu.memory_space<vmem>>, %arg4: memref<8x8xf32, #tpu.memory_space<vmem>>, %arg5: memref<8x1xf32, #tpu.memory_space<vmem>>, %arg6: memref<2x8xf32, #tpu.memory_space<vmem>>, %arg7: memref<2x1xf32, #tpu.memory_space<vmem>>, %arg8: memref<2x1024xf32, #tpu.memory_space<vmem>>) attributes {dimension_semantics = [#tpu.dimension_semantics<parallel>], iteration_bounds = array<i64: 2>, scalar_prefetch = 0 : i64, scratch_operands = 0 : i64, tpu.core_type = #tpu.core_type<tc>, window_params = [{transform_indices = @transform_0, window_bounds = array<i64: 1024, 6>}, {pipeline_mode = #tpu.pipeline_mode<synchronous>, transform_indices = @transform_1, window_bounds = array<i64: 8, 6>}, {pipeline_mode = #tpu.pipeline_mode<synchronous>, transform_indices = @transform_2, window_bounds = array<i64: 8, 1>}, {pipeline_mode = #tpu.pipeline_mode<synchronous>, transform_indices = @transform_3, window_bounds = array<i64: 8, 8>}, {pipeline_mode = #tpu.pipeline_mode<synchronous>, transform_indices = @transform_4, window_bounds = array<i64: 8, 1>}, {pipeline_mode = #tpu.pipeline_mode<synchronous>, transform_indices = @transform_5, window_bounds = array<i64: 2, 8>}, {pipeline_mode = #tpu.pipeline_mode<synchronous>, transform_indices = @transform_6, window_bounds = array<i64: 2, 1>}, {transform_indices = @transform_7, window_bounds = array<i64: 2, 1024>}]} {
    %c0 = arith.constant 0 : index
    %c0_0 = arith.constant 0 : index
    %0 = vector.load %arg2[%c0, %c0_0] : memref<8x6xf32, #tpu.memory_space<vmem>>, vector<8x6xf32>
    %c0_1 = arith.constant 0 : index
    %c0_2 = arith.constant 0 : index
    %1 = vector.load %arg4[%c0_1, %c0_2] : memref<8x8xf32, #tpu.memory_space<vmem>>, vector<8x8xf32>
    %c0_3 = arith.constant 0 : index
    %c0_4 = arith.constant 0 : index
    %2 = vector.load %arg6[%c0_3, %c0_4] : memref<2x8xf32, #tpu.memory_space<vmem>>, vector<2x8xf32>
    %c0_5 = arith.constant 0 : index
    %c0_6 = arith.constant 0 : index
    %3 = vector.load %arg3[%c0_5, %c0_6] : memref<8x1xf32, #tpu.memory_space<vmem>>, vector<8x1xf32>
    %4 = vector.shape_cast %3 : vector<8x1xf32> to vector<8x1xf32>
    %5 = vector.broadcast %4 : vector<8x1xf32> to vector<8x512xf32>
    %c0_7 = arith.constant 0 : index
    %c0_8 = arith.constant 0 : index
    %6 = vector.load %arg5[%c0_7, %c0_8] : memref<8x1xf32, #tpu.memory_space<vmem>>, vector<8x1xf32>
    %7 = vector.shape_cast %6 : vector<8x1xf32> to vector<8x1xf32>
    %8 = vector.broadcast %7 : vector<8x1xf32> to vector<8x512xf32>
    %c0_9 = arith.constant 0 : index
    %c0_10 = arith.constant 0 : index
    %9 = vector.load %arg7[%c0_9, %c0_10] : memref<2x1xf32, #tpu.memory_space<vmem>>, vector<2x1xf32>
    %10 = vector.shape_cast %9 : vector<2x1xf32> to vector<2x1xf32>
    %11 = vector.broadcast %10 : vector<2x1xf32> to vector<2x512xf32>
    %c0_i32 = arith.constant 0 : i32
    %c512_i32 = arith.constant 512 : i32
    %12 = arith.muli %c0_i32, %c512_i32 : i32
    %13 = tpu.assume_multiple %12, 512 : i32
    %14 = arith.index_cast %13 : i32 to index
    %c0_11 = arith.constant 0 : index
    %15 = vector.load %arg1[%14, %c0_11] : memref<1024x6xf32, #tpu.memory_space<vmem>>, vector<512x6xf32>
    %cst = arith.constant dense<0.000000e+00> : vector<8x512xf32>
    %16 = tpu.matmul %0, %15, %cst {dimension_numbers = #tpu.dot_dimension_numbers<[1], [1], [0], [0], [0, 0, 1, 0], [], []>} : vector<8x6xf32>, vector<512x6xf32>, vector<8x512xf32> -> vector<8x512xf32>
    %17 = arith.addf %16, %5 : vector<8x512xf32>
    %cst_12 = arith.constant 0.000000e+00 : f32
    %18 = vector.broadcast %cst_12 : f32 to vector<8x512xf32>
    %19 = arith.maximumf %17, %18 : vector<8x512xf32>
    %cst_13 = arith.constant dense<0.000000e+00> : vector<8x512xf32>
    %20 = tpu.matmul %1, %19, %cst_13 {dimension_numbers = #tpu.dot_dimension_numbers<[1], [0], [0], [1], [0, 0, 1, 1], [], []>} : vector<8x8xf32>, vector<8x512xf32>, vector<8x512xf32> -> vector<8x512xf32>
    %21 = arith.addf %20, %8 : vector<8x512xf32>
    %cst_14 = arith.constant 0.000000e+00 : f32
    %22 = vector.broadcast %cst_14 : f32 to vector<8x512xf32>
    %23 = arith.maximumf %21, %22 : vector<8x512xf32>
    %cst_15 = arith.constant dense<0.000000e+00> : vector<2x512xf32>
    %24 = tpu.matmul %2, %23, %cst_15 {dimension_numbers = #tpu.dot_dimension_numbers<[1], [0], [0], [1], [0, 0, 1, 1], [], []>} : vector<2x8xf32>, vector<8x512xf32>, vector<2x512xf32> -> vector<2x512xf32>
    %25 = arith.addf %24, %11 : vector<2x512xf32>
    %cst_16 = arith.constant 0.000000e+00 : f32
    %26 = vector.broadcast %cst_16 : f32 to vector<2x512xf32>
    %27 = arith.maximumf %25, %26 : vector<2x512xf32>
    %c0_17 = arith.constant 0 : index
    %28 = arith.index_cast %13 : i32 to index
    %29 = vector.load %arg8[%c0_17, %28] : memref<2x1024xf32, #tpu.memory_space<vmem>>, vector<2x512xf32>
    tpu.vector_store %arg8[%c0_17, %28], %27 {strides = array<i32>} : memref<2x1024xf32, #tpu.memory_space<vmem>>, vector<2x512xf32>,
    %c1_i32 = arith.constant 1 : i32
    %c512_i32_18 = arith.constant 512 : i32
    %30 = arith.muli %c1_i32, %c512_i32_18 : i32
    %31 = tpu.assume_multiple %30, 512 : i32
    %32 = arith.index_cast %31 : i32 to index
    %c0_19 = arith.constant 0 : index
    %33 = vector.load %arg1[%32, %c0_19] : memref<1024x6xf32, #tpu.memory_space<vmem>>, vector<512x6xf32>
    %cst_20 = arith.constant dense<0.000000e+00> : vector<8x512xf32>
    %34 = tpu.matmul %0, %33, %cst_20 {dimension_numbers = #tpu.dot_dimension_numbers<[1], [1], [0], [0], [0, 0, 1, 0], [], []>} : vector<8x6xf32>, vector<512x6xf32>, vector<8x512xf32> -> vector<8x512xf32>
    %35 = arith.addf %34, %5 : vector<8x512xf32>
    %cst_21 = arith.constant 0.000000e+00 : f32
    %36 = vector.broadcast %cst_21 : f32 to vector<8x512xf32>
    %37 = arith.maximumf %35, %36 : vector<8x512xf32>
    %cst_22 = arith.constant dense<0.000000e+00> : vector<8x512xf32>
    %38 = tpu.matmul %1, %37, %cst_22 {dimension_numbers = #tpu.dot_dimension_numbers<[1], [0], [0], [1], [0, 0, 1, 1], [], []>} : vector<8x8xf32>, vector<8x512xf32>, vector<8x512xf32> -> vector<8x512xf32>
    %39 = arith.addf %38, %8 : vector<8x512xf32>
    %cst_23 = arith.constant 0.000000e+00 : f32
    %40 = vector.broadcast %cst_23 : f32 to vector<8x512xf32>
    %41 = arith.maximumf %39, %40 : vector<8x512xf32>
    %cst_24 = arith.constant dense<0.000000e+00> : vector<2x512xf32>
    %42 = tpu.matmul %2, %41, %cst_24 {dimension_numbers = #tpu.dot_dimension_numbers<[1], [0], [0], [1], [0, 0, 1, 1], [], []>} : vector<2x8xf32>, vector<8x512xf32>, vector<2x512xf32> -> vector<2x512xf32>
    %43 = arith.addf %42, %11 : vector<2x512xf32>
    %cst_25 = arith.constant 0.000000e+00 : f32
    %44 = vector.broadcast %cst_25 : f32 to vector<2x512xf32>
    %45 = arith.maximumf %43, %44 : vector<2x512xf32>
    %c0_26 = arith.constant 0 : index
    %46 = arith.index_cast %31 : i32 to index
    %47 = vector.load %arg8[%c0_26, %46] : memref<2x1024xf32, #tpu.memory_space<vmem>>, vector<2x512xf32>
    tpu.vector_store %arg8[%c0_26, %46], %45 {strides = array<i32>} : memref<2x1024xf32, #tpu.memory_space<vmem>>, vector<2x512xf32>,
    %c2_i32 = arith.constant 2 : i32
    return
  }
  func.func @transform_0(%arg0: i32) -> (i32, i32) {
    %c0_i32 = arith.constant 0 : i32
    %c0_i32_0 = arith.constant 0 : i32
    return %arg0, %c0_i32 : i32, i32
  }
  func.func @transform_1(%arg0: i32) -> (i32, i32) {
    %c0_i32 = arith.constant 0 : i32
    %c0_i32_0 = arith.constant 0 : i32
    %c0_i32_1 = arith.constant 0 : i32
    return %c0_i32, %c0_i32_0 : i32, i32
  }
  func.func @transform_2(%arg0: i32) -> (i32, i32) {
    %c0_i32 = arith.constant 0 : i32
    %c0_i32_0 = arith.constant 0 : i32
    %c0_i32_1 = arith.constant 0 : i32
    return %c0_i32, %c0_i32_0 : i32, i32
  }
  func.func @transform_3(%arg0: i32) -> (i32, i32) {
    %c0_i32 = arith.constant 0 : i32
    %c0_i32_0 = arith.constant 0 : i32
    %c0_i32_1 = arith.constant 0 : i32
    return %c0_i32, %c0_i32_0 : i32, i32
  }
  func.func @transform_4(%arg0: i32) -> (i32, i32) {
    %c0_i32 = arith.constant 0 : i32
    %c0_i32_0 = arith.constant 0 : i32
    %c0_i32_1 = arith.constant 0 : i32
    return %c0_i32, %c0_i32_0 : i32, i32
  }
  func.func @transform_5(%arg0: i32) -> (i32, i32) {
    %c0_i32 = arith.constant 0 : i32
    %c0_i32_0 = arith.constant 0 : i32
    %c0_i32_1 = arith.constant 0 : i32
    return %c0_i32, %c0_i32_0 : i32, i32
  }
  func.func @transform_6(%arg0: i32) -> (i32, i32) {
    %c0_i32 = arith.constant 0 : i32
    %c0_i32_0 = arith.constant 0 : i32
    %c0_i32_1 = arith.constant 0 : i32
    return %c0_i32, %c0_i32_0 : i32, i32
  }
  func.func @transform_7(%arg0: i32) -> (i32, i32) {
    %c0_i32 = arith.constant 0 : i32
    %c0_i32_0 = arith.constant 0 : i32
    return %c0_i32, %arg0 : i32, i32
  }
}

</mosaic_0001>

<llo_original>
// kernel: tpu_custom_call.1
$region0: #{tpu_custom_call.1}
  #allocation0 [shape = 'u32[]', space=smem, size = 0x4, offset = 0x4, fixed_abs, tag = 'smem constant byte address 0x4 - core index']
  #allocation1 [shape = 'u32[72,128]{1,0:T(1,128)}', space=vmem, size = 0x9000, scoped, tag = 'internal scratch']
  %s0 = inlined_call_operand.vmem [shape: f32[2048,6], index: 0, kind: input, shape index: {}]
  %s1 = inlined_call_operand.vmem [shape: f32[8,6], index: 1, kind: input, shape index: {}]
  %s2 = inlined_call_operand.vmem [shape: f32[8,1], index: 2, kind: input, shape index: {}]
  %s3 = inlined_call_operand.vmem [shape: f32[8,8], index: 3, kind: input, shape index: {}]
  %s4 = inlined_call_operand.vmem [shape: f32[8,1], index: 4, kind: input, shape index: {}]
  %s5 = inlined_call_operand.vmem [shape: f32[2,8], index: 5, kind: input, shape index: {}]
  %s6 = inlined_call_operand.vmem [shape: f32[2,1], index: 6, kind: input, shape index: {}]
  %s7 = inlined_call_operand.hbm [shape: f32[2,2048], index: 7, kind: output, shape index: {}]
  %s8 = sld [smem:[#allocation0]]
  $region61: #{tpu_custom_call.1} parent=0
    _
  %s10 = ssub.s32 1, %s8
  %s11 = scalar_select 0, %s10, %s8
  $region1: #{tpu_custom_call.1} parent=0
    #allocation2 [shape = 'u8[16384]{0}', space=vmem, size = 0x4000, scoped, tag = 'output window, operand 0']
    #allocation3 [shape = 's32[2]{0}', space=sflag, size = 0x8, scoped, tag = 'scoped memory for tpu_custom_call.1']
    %12 = vsyncpa [#allocation3], 0
    %s13 = scalar_lea.sflag [#allocation3], 1
    %14 = vsyncpa %s13, 0
    loop: start=0, step=1, limit=4
    $region2: #{tpu_custom_call.1} parent=1 // loop_pre_header
      _
    $region3: #{tpu_custom_call.1} parent=1 // loop_header
      %s16 = sphi 0, %s20
      %p17 = scmp.ge.s32.totalorder %s16, 4
      %s26 = sphi 0, %s28
      %s29 = sphi 0, %s26
      %s30 = sphi 0, %s29
      %s46 = sphi 0, %s30
      %s50 = sphi 0, %s50
      %s52 = sphi 0, %s50
      %s53 = sphi 0, %s52
      %s67 = sphi 0, %s53
      %s71 = sphi 0, %s71
      %s73 = sphi 0, %s71
      %s74 = sphi 0, %s73
      %s88 = sphi 0, %s74
      %s92 = sphi 0, %s92
      %s94 = sphi 0, %s92
      %s95 = sphi 0, %s94
      %s109 = sphi 0, %s95
      %s113 = sphi 0, %s113
      %s115 = sphi 0, %s113
      %s116 = sphi 0, %s115
      %s130 = sphi 0, %s116
      %s134 = sphi 0, %s134
      %s136 = sphi 0, %s134
      %s137 = sphi 0, %s136
      %s151 = sphi 0, %s137
      %s155 = sphi 0, %s155
      %s157 = sphi 0, %s155
      %s158 = sphi 0, %s157
      %s172 = sphi 0, %s158
      %s178 = sphi 0, %s180
      %s181 = sphi 0, %s178
      %s182 = sphi 0, %s181
      %s198 = sphi 0, %s182
    $region4: #{tpu_custom_call.1} parent=1 // loop_header_branch
      %19 = sbr.rel (%p17) target = $region8
    $region5: #{tpu_custom_call.1} parent=1 // loop_body
      %s21 = ssub.s32 %s16, 1
      %s22 = ssub.s32 %s16, 2
      %s23 = sadd.s32 %s16, 1
      %s24 = ssub.s32 %s16, %s23
      %p25 = scmp.eq.s32.totalorder %s24, 0
      %s27 = sadd.s32 %s26, 1
      %s28 = scalar_select %p25, %s26, %s27
      %p31 = pneg %p25
      %p32 = scmp.eq.s32.totalorder %s16, 1
      %p33 = por %p31, %p32
      %p34 = scmp.ne.s32.totalorder %s26, %s29
      %p35 = scmp.eq.s32.totalorder %s16, 0
      %p36 = por %p34, %p35
      %p37 = scmp.ne.s32.totalorder %s26, %s29
      %p38 = scmp.eq.s32.totalorder %s21, 1
      %p39 = por %p37, %p38
      %p40 = scmp.ne.s32.totalorder %s29, %s30
      %p41 = scmp.eq.s32.totalorder %s21, 0
      %p42 = por %p40, %p41
      %p43 = scmp.ne.s32.totalorder %s29, %s30
      %p44 = scmp.eq.s32.totalorder %s22, 1
      %p45 = por %p43, %p44
      %p47 = scmp.ne.s32.totalorder %s30, %s46
      %p48 = scmp.eq.s32.totalorder %s22, 0
      %p49 = por %p47, %p48
      %s51 = sadd.s32 %s50, 1
      %p54 = scmp.eq.s32.totalorder %s16, 1
      %p55 = scmp.ne.s32.totalorder %s50, %s52
      %p56 = scmp.eq.s32.totalorder %s16, 0
      %p57 = por %p55, %p56
      %p58 = scmp.ne.s32.totalorder %s50, %s52
      %p59 = scmp.eq.s32.totalorder %s21, 1
      %p60 = por %p58, %p59
      %p61 = scmp.ne.s32.totalorder %s52, %s53
      %p62 = scmp.eq.s32.totalorder %s21, 0
      %p63 = por %p61, %p62
      %p64 = scmp.ne.s32.totalorder %s52, %s53
      %p65 = scmp.eq.s32.totalorder %s22, 1
      %p66 = por %p64, %p65
      %p68 = scmp.ne.s32.totalorder %s53, %s67
      %p69 = scmp.eq.s32.totalorder %s22, 0
      %p70 = por %p68, %p69
      %s72 = sadd.s32 %s71, 1
      %p75 = scmp.eq.s32.totalorder %s16, 1
      %p76 = scmp.ne.s32.totalorder %s71, %s73
      %p77 = scmp.eq.s32.totalorder %s16, 0
      %p78 = por %p76, %p77
      %p79 = scmp.ne.s32.totalorder %s71, %s73
      %p80 = scmp.eq.s32.totalorder %s21, 1
      %p81 = por %p79, %p80
      %p82 = scmp.ne.s32.totalorder %s73, %s74
      %p83 = scmp.eq.s32.totalorder %s21, 0
      %p84 = por %p82, %p83
      %p85 = scmp.ne.s32.totalorder %s73, %s74
      %p86 = scmp.eq.s32.totalorder %s22, 1
      %p87 = por %p85, %p86
      %p89 = scmp.ne.s32.totalorder %s74, %s88
      %p90 = scmp.eq.s32.totalorder %s22, 0
      %p91 = por %p89, %p90
      %s93 = sadd.s32 %s92, 1
      %p96 = scmp.eq.s32.totalorder %s16, 1
      %p97 = scmp.ne.s32.totalorder %s92, %s94
      %p98 = scmp.eq.s32.totalorder %s16, 0
      %p99 = por %p97, %p98
      %p100 = scmp.ne.s32.totalorder %s92, %s94
      %p101 = scmp.eq.s32.totalorder %s21, 1
      %p102 = por %p100, %p101
      %p103 = scmp.ne.s32.totalorder %s94, %s95
      %p104 = scmp.eq.s32.totalorder %s21, 0
      %p105 = por %p103, %p104
      %p106 = scmp.ne.s32.totalorder %s94, %s95
      %p107 = scmp.eq.s32.totalorder %s22, 1
      %p108 = por %p106, %p107
      %p110 = scmp.ne.s32.totalorder %s95, %s109
      %p111 = scmp.eq.s32.totalorder %s22, 0
      %p112 = por %p110, %p111
      %s114 = sadd.s32 %s113, 1
      %p117 = scmp.eq.s32.totalorder %s16, 1
      %p118 = scmp.ne.s32.totalorder %s113, %s115
      %p119 = scmp.eq.s32.totalorder %s16, 0
      %p120 = por %p118, %p119
      %p121 = scmp.ne.s32.totalorder %s113, %s115
      %p122 = scmp.eq.s32.totalorder %s21, 1
      %p123 = por %p121, %p122
      %p124 = scmp.ne.s32.totalorder %s115, %s116
      %p125 = scmp.eq.s32.totalorder %s21, 0
      %p126 = por %p124, %p125
      %p127 = scmp.ne.s32.totalorder %s115, %s116
      %p128 = scmp.eq.s32.totalorder %s22, 1
      %p129 = por %p127, %p128
      %p131 = scmp.ne.s32.totalorder %s116, %s130
      %p132 = scmp.eq.s32.totalorder %s22, 0
      %p133 = por %p131, %p132
      %s135 = sadd.s32 %s134, 1
      %p138 = scmp.eq.s32.totalorder %s16, 1
      %p139 = scmp.ne.s32.totalorder %s134, %s136
      %p140 = scmp.eq.s32.totalorder %s16, 0
      %p141 = por %p139, %p140
      %p142 = scmp.ne.s32.totalorder %s134, %s136
      %p143 = scmp.eq.s32.totalorder %s21, 1
      %p144 = por %p142, %p143
      %p145 = scmp.ne.s32.totalorder %s136, %s137
      %p146 = scmp.eq.s32.totalorder %s21, 0
      %p147 = por %p145, %p146
      %p148 = scmp.ne.s32.totalorder %s136, %s137
      %p149 = scmp.eq.s32.totalorder %s22, 1
      %p150 = por %p148, %p149
      %p152 = scmp.ne.s32.totalorder %s137, %s151
      %p153 = scmp.eq.s32.totalorder %s22, 0
      %p154 = por %p152, %p153
      %s156 = sadd.s32 %s155, 1
      %p159 = scmp.eq.s32.totalorder %s16, 1
      %p160 = scmp.ne.s32.totalorder %s155, %s157
      %p161 = scmp.eq.s32.totalorder %s16, 0
      %p162 = por %p160, %p161
      %p163 = scmp.ne.s32.totalorder %s155, %s157
      %p164 = scmp.eq.s32.totalorder %s21, 1
      %p165 = por %p163, %p164
      %p166 = scmp.ne.s32.totalorder %s157, %s158
      %p167 = scmp.eq.s32.totalorder %s21, 0
      %p168 = por %p166, %p167
      %p169 = scmp.ne.s32.totalorder %s157, %s158
      %p170 = scmp.eq.s32.totalorder %s22, 1
      %p171 = por %p169, %p170
      %p173 = scmp.ne.s32.totalorder %s158, %s172
      %p174 = scmp.eq.s32.totalorder %s22, 0
      %p175 = por %p173, %p174
      %s176 = ssub.s32 %s16, %s23
      %p177 = scmp.eq.s32.totalorder %s176, 0
      %s179 = sadd.s32 %s178, 1
      %s180 = scalar_select %p177, %s178, %s179
      %p183 = pneg %p177
      %p184 = scmp.eq.s32.totalorder %s16, 1
      %p185 = por %p183, %p184
      %p186 = scmp.ne.s32.totalorder %s178, %s181
      %p187 = scmp.eq.s32.totalorder %s16, 0
      %p188 = por %p186, %p187
      %p189 = scmp.ne.s32.totalorder %s178, %s181
      %p190 = scmp.eq.s32.totalorder %s21, 1
      %p191 = por %p189, %p190
      %p192 = scmp.ne.s32.totalorder %s181, %s182
      %p193 = scmp.eq.s32.totalorder %s21, 0
      %p194 = por %p192, %p193
      %p195 = scmp.ne.s32.totalorder %s181, %s182
      %p196 = scmp.eq.s32.totalorder %s22, 1
      %p197 = por %p195, %p196
      %p199 = scmp.ne.s32.totalorder %s182, %s198
      %p200 = scmp.eq.s32.totalorder %s22, 0
      %p201 = por %p199, %p200
      %p202 = scmp.le.s32.totalorder 1, %s16
      %p203 = scmp.lt.s32.totalorder %s16, 3
      %p204 = pnand %p202, %p203
      %p205 = pneg %p204
      // Predicated region
      $region9: #{tpu_custom_call.1} parent=5 // pred_check
        _
      $region10: #{tpu_custom_call.1} parent=5 // pred_check_branch
        %207 = sbr.rel (%p204) target = $region12
      $region11: #{tpu_custom_call.1} parent=5 // pred_region
        %s208 = ssub.s32 %s16, 1
        // Predicated region
        $region13: #{tpu_custom_call.1} parent=11 // pred_check
          %p209 = pneg %p63
        $region14: #{tpu_custom_call.1} parent=11 // pred_check_branch
          %211 = sbr.rel (%p209) target = $region16
        $region15: #{tpu_custom_call.1} parent=11 // pred_region
          _
        $region16: #{tpu_custom_call.1} parent=11 // pred_fallthru
          _
        // Predicated region
        $region17: #{tpu_custom_call.1} parent=11 // pred_check
          %p212 = pneg %p84
        $region18: #{tpu_custom_call.1} parent=11 // pred_check_branch
          %214 = sbr.rel (%p212) target = $region20
        $region19: #{tpu_custom_call.1} parent=11 // pred_region
          _
        $region20: #{tpu_custom_call.1} parent=11 // pred_fallthru
          _
        // Predicated region
        $region21: #{tpu_custom_call.1} parent=11 // pred_check
          %p215 = pneg %p105
        $region22: #{tpu_custom_call.1} parent=11 // pred_check_branch
          %217 = sbr.rel (%p215) target = $region24
        $region23: #{tpu_custom_call.1} parent=11 // pred_region
          _
        $region24: #{tpu_custom_call.1} parent=11 // pred_fallthru
          _
        // Predicated region
        $region25: #{tpu_custom_call.1} parent=11 // pred_check
          %p218 = pneg %p126
        $region26: #{tpu_custom_call.1} parent=11 // pred_check_branch
          %220 = sbr.rel (%p218) target = $region28
        $region27: #{tpu_custom_call.1} parent=11 // pred_region
          _
        $region28: #{tpu_custom_call.1} parent=11 // pred_fallthru
          _
        // Predicated region
        $region29: #{tpu_custom_call.1} parent=11 // pred_check
          %p221 = pneg %p147
        $region30: #{tpu_custom_call.1} parent=11 // pred_check_branch
          %223 = sbr.rel (%p221) target = $region32
        $region31: #{tpu_custom_call.1} parent=11 // pred_region
          _
        $region32: #{tpu_custom_call.1} parent=11 // pred_fallthru
          _
        // Predicated region
        $region33: #{tpu_custom_call.1} parent=11 // pred_check
          %p224 = pneg %p168
        $region34: #{tpu_custom_call.1} parent=11 // pred_check_branch
          %226 = sbr.rel (%p224) target = $region36
        $region35: #{tpu_custom_call.1} parent=11 // pred_region
          _
        $region36: #{tpu_custom_call.1} parent=11 // pred_fallthru
          _
      $region12: #{tpu_custom_call.1} parent=5 // pred_fallthru
        _
      %p227 = scmp.lt.s32.totalorder %s16, 2
      // Predicated region
      $region37: #{tpu_custom_call.1} parent=5 // pred_check
        %p228 = pneg %p227
      $region38: #{tpu_custom_call.1} parent=5 // pred_check_branch
        %230 = sbr.rel (%p228) target = $region40
      $region39: #{tpu_custom_call.1} parent=5 // pred_region
        // Predicated region
        $region41: #{tpu_custom_call.1} parent=39 // pred_check
          %p231 = pneg %p36
        $region42: #{tpu_custom_call.1} parent=39 // pred_check_branch
          %233 = sbr.rel (%p231) target = $region44
        $region43: #{tpu_custom_call.1} parent=39 // pred_region
          %s234 = smul.u32 128, %s16
          %p235 = scmp.lt.s32.totalorder %s234, 255
          %s236 = scalar_select %p235, %s234, 255
          %s237 = smul.addr %s236, 8
          %s238 = scalar_lea.vmem %s0, %s237
          %s239 = smul.u32 128, %s16
        $region44: #{tpu_custom_call.1} parent=39 // pred_fallthru
          _
      $region40: #{tpu_custom_call.1} parent=5 // pred_fallthru
        _
      %p240 = scmp.le.s32.totalorder 1, %s16
      %p241 = scmp.lt.s32.totalorder %s16, 3
      %p242 = pnand %p240, %p241
      %p243 = pneg %p242
      // Predicated region
      $region45: #{tpu_custom_call.1} parent=5 // pred_check
        _
      $region46: #{tpu_custom_call.1} parent=5 // pred_check_branch
        %245 = sbr.rel (%p242) target = $region48
      $region47: #{tpu_custom_call.1} parent=5 // pred_region
        %s246 = ssub.s32 %s16, 1
        %s247 = smul.u32 128, %s21
        %p248 = scmp.lt.s32.totalorder %s247, 255
        %s249 = scalar_select %p248, %s247, 255
        %s250 = smul.addr %s249, 8
        %s251 = scalar_lea.vmem %s0, %s250
        %p252 = pneg %p42
        %p253 = pneg %p39
        %p254 = pneg %p63
        %p255 = pneg %p60
        %p256 = pneg %p84
        %p257 = pneg %p81
        %p258 = pneg %p105
        %p259 = pneg %p102
        %p260 = pneg %p126
        %p261 = pneg %p123
        %p262 = pneg %p147
        %p263 = pneg %p144
        %p264 = pneg %p168
        %p265 = pneg %p165
        %p266 = pneg %p194
        %p267 = pneg %p191
        %s268 = sand.u32 %s181, 1
        %s269 = scalar_lea.sflag [#allocation3], %s268
        %s270 = sand.u32 %s181, 1
        %s271 = smul.addr %s270, 16
        %s272 = scalar_lea.vmem [#allocation2], %s271
        %s273 = smul.u32 128, %s21
        %p274 = scmp.lt.s32.totalorder %s273, 255
        %s275 = scalar_select %p274, %s273, 255
        %s276 = smul.addr %s275, 8
        %s277 = scalar_lea.vmem %s0, %s276
        %s278 = smul.u32 128, %s21
        %s279 = smul.u32 8, %s21
        %v280 = vld [vmem:[%s1] sm:$0xff]
        %v281 = vld [vmem:[%s3] sm:$0xff]
        %v282 = vld [vmem:[%s5] sm:$0x3]
        %v283 = vld [vmem:[%s2] sm:$0xff]
        %285 = vset.pattern.permute.xlu0 0
        %286 = vperm.xlu0 %285, %v283
        %v287 = vpop.permute.xlu0 %286
        %v289 = vld [vmem:[%s4] sm:$0xff]
        %291 = vset.pattern.permute.xlu0 0
        %292 = vperm.xlu0 %291, %v289
        %v293 = vpop.permute.xlu0 %292
        %v295 = vld [vmem:[%s6] sm:$0x3]
        %297 = vset.pattern.permute.xlu0 0
        %298 = vperm.xlu0 %297, %v295
        %v299 = vpop.permute.xlu0 %298
        %v301 = vld [vmem:[%s277] sm:$0xff]
        %v302 = vld [vmem:[%s277 + $0x8] sm:$0xff]
        %v303 = vld [vmem:[%s277 + $0x10] sm:$0xff]
        %v304 = vld [vmem:[%s277 + $0x18] sm:$0xff]
        %v305 = vld [vmem:[%s277 + $0x20] sm:$0xff]
        %v306 = vld [vmem:[%s277 + $0x28] sm:$0xff]
        %v307 = vld [vmem:[%s277 + $0x30] sm:$0xff]
        %v308 = vld [vmem:[%s277 + $0x38] sm:$0xff]
        %v309 = vld [vmem:[%s277 + $0x40] sm:$0xff]
        %v310 = vld [vmem:[%s277 + $0x48] sm:$0xff]
        %v311 = vld [vmem:[%s277 + $0x50] sm:$0xff]
        %v312 = vld [vmem:[%s277 + $0x58] sm:$0xff]
        %v313 = vld [vmem:[%s277 + $0x60] sm:$0xff]
        %v314 = vld [vmem:[%s277 + $0x68] sm:$0xff]
        %v315 = vld [vmem:[%s277 + $0x70] sm:$0xff]
        %v316 = vld [vmem:[%s277 + $0x78] sm:$0xff]
        %v317 = vld [vmem:[%s277 + $0x80] sm:$0xff]
        %v318 = vld [vmem:[%s277 + $0x88] sm:$0xff]
        %v319 = vld [vmem:[%s277 + $0x90] sm:$0xff]
        %v320 = vld [vmem:[%s277 + $0x98] sm:$0xff]
        %v321 = vld [vmem:[%s277 + $0xa0] sm:$0xff]
        %v322 = vld [vmem:[%s277 + $0xa8] sm:$0xff]
        %v323 = vld [vmem:[%s277 + $0xb0] sm:$0xff]
        %v324 = vld [vmem:[%s277 + $0xb8] sm:$0xff]
        %v325 = vld [vmem:[%s277 + $0xc0] sm:$0xff]
        %v326 = vld [vmem:[%s277 + $0xc8] sm:$0xff]
        %v327 = vld [vmem:[%s277 + $0xd0] sm:$0xff]
        %v328 = vld [vmem:[%s277 + $0xd8] sm:$0xff]
        %v329 = vld [vmem:[%s277 + $0xe0] sm:$0xff]
        %v330 = vld [vmem:[%s277 + $0xe8] sm:$0xff]
        %v331 = vld [vmem:[%s277 + $0xf0] sm:$0xff]
        %v332 = vld [vmem:[%s277 + $0xf8] sm:$0xff]
        %v333 = vld [vmem:[%s277 + $0x100] sm:$0xff]
        %v334 = vld [vmem:[%s277 + $0x108] sm:$0xff]
        %v335 = vld [vmem:[%s277 + $0x110] sm:$0xff]
        %v336 = vld [vmem:[%s277 + $0x118] sm:$0xff]
        %v337 = vld [vmem:[%s277 + $0x120] sm:$0xff]
        %v338 = vld [vmem:[%s277 + $0x128] sm:$0xff]
        %v339 = vld [vmem:[%s277 + $0x130] sm:$0xff]
        %v340 = vld [vmem:[%s277 + $0x138] sm:$0xff]
        %v341 = vld [vmem:[%s277 + $0x140] sm:$0xff]
        %v342 = vld [vmem:[%s277 + $0x148] sm:$0xff]
        %v343 = vld [vmem:[%s277 + $0x150] sm:$0xff]
        %v344 = vld [vmem:[%s277 + $0x158] sm:$0xff]
        %v345 = vld [vmem:[%s277 + $0x160] sm:$0xff]
        %v346 = vld [vmem:[%s277 + $0x168] sm:$0xff]
        %v347 = vld [vmem:[%s277 + $0x170] sm:$0xff]
        %v348 = vld [vmem:[%s277 + $0x178] sm:$0xff]
        %v349 = vld [vmem:[%s277 + $0x180] sm:$0xff]
        %v350 = vld [vmem:[%s277 + $0x188] sm:$0xff]
        %v351 = vld [vmem:[%s277 + $0x190] sm:$0xff]
        %v352 = vld [vmem:[%s277 + $0x198] sm:$0xff]
        %v353 = vld [vmem:[%s277 + $0x1a0] sm:$0xff]
        %v354 = vld [vmem:[%s277 + $0x1a8] sm:$0xff]
        %v355 = vld [vmem:[%s277 + $0x1b0] sm:$0xff]
        %v356 = vld [vmem:[%s277 + $0x1b8] sm:$0xff]
        %v357 = vld [vmem:[%s277 + $0x1c0] sm:$0xff]
        %v358 = vld [vmem:[%s277 + $0x1c8] sm:$0xff]
        %v359 = vld [vmem:[%s277 + $0x1d0] sm:$0xff]
        %v360 = vld [vmem:[%s277 + $0x1d8] sm:$0xff]
        %v361 = vld [vmem:[%s277 + $0x1e0] sm:$0xff]
        %v362 = vld [vmem:[%s277 + $0x1e8] sm:$0xff]
        %v363 = vld [vmem:[%s277 + $0x1f0] sm:$0xff]
        %v364 = vld [vmem:[%s277 + $0x1f8] sm:$0xff]
        %vm365 = vcmask 48128
        %v367 = vsel %vm365, %v280, 0
        %v370 = vsel %vm365, %v301, 0
        %v373 = vsel %vm365, %v302, 0
        %v376 = vsel %vm365, %v303, 0
        %v379 = vsel %vm365, %v304, 0
        %v382 = vsel %vm365, %v305, 0
        %v385 = vsel %vm365, %v306, 0
        %v388 = vsel %vm365, %v307, 0
        %v391 = vsel %vm365, %v308, 0
        %v394 = vsel %vm365, %v309, 0
        %v397 = vsel %vm365, %v310, 0
        %v400 = vsel %vm365, %v311, 0
        %v403 = vsel %vm365, %v312, 0
        %v406 = vsel %vm365, %v313, 0
        %v409 = vsel %vm365, %v314, 0
        %v412 = vsel %vm365, %v315, 0
        %v415 = vsel %vm365, %v316, 0
        %v418 = vsel %vm365, %v317, 0
        %v421 = vsel %vm365, %v318, 0
        %v424 = vsel %vm365, %v319, 0
        %v427 = vsel %vm365, %v320, 0
        %v430 = vsel %vm365, %v321, 0
        %v433 = vsel %vm365, %v322, 0
        %v436 = vsel %vm365, %v323, 0
        %v439 = vsel %vm365, %v324, 0
        %v442 = vsel %vm365, %v325, 0
        %v445 = vsel %vm365, %v326, 0
        %v448 = vsel %vm365, %v327, 0
        %v451 = vsel %vm365, %v328, 0
        %v454 = vsel %vm365, %v329, 0
        %v457 = vsel %vm365, %v330, 0
        %v460 = vsel %vm365, %v331, 0
        %v463 = vsel %vm365, %v332, 0
        %v466 = vsel %vm365, %v333, 0
        %v469 = vsel %vm365, %v334, 0
        %v472 = vsel %vm365, %v335, 0
        %v475 = vsel %vm365, %v336, 0
        %v478 = vsel %vm365, %v337, 0
        %v481 = vsel %vm365, %v338, 0
        %v484 = vsel %vm365, %v339, 0
        %v487 = vsel %vm365, %v340, 0
        %v490 = vsel %vm365, %v341, 0
        %v493 = vsel %vm365, %v342, 0
        %v496 = vsel %vm365, %v343, 0
        %v499 = vsel %vm365, %v344, 0
        %v502 = vsel %vm365, %v345, 0
        %v505 = vsel %vm365, %v346, 0
        %v508 = vsel %vm365, %v347, 0
        %v511 = vsel %vm365, %v348, 0
        %v514 = vsel %vm365, %v349, 0
        %v517 = vsel %vm365, %v350, 0
        %v520 = vsel %vm365, %v351, 0
        %v523 = vsel %vm365, %v352, 0
        %v526 = vsel %vm365, %v353, 0
        %v529 = vsel %vm365, %v354, 0
        %v532 = vsel %vm365, %v355, 0
        %v535 = vsel %vm365, %v356, 0
        %v538 = vsel %vm365, %v357, 0
        %v541 = vsel %vm365, %v358, 0
        %v544 = vsel %vm365, %v359, 0
        %v547 = vsel %vm365, %v360, 0
        %v550 = vsel %vm365, %v361, 0
        %v553 = vsel %vm365, %v362, 0
        %v556 = vsel %vm365, %v363, 0
        %v559 = vsel %vm365, %v364, 0
        %561 = vmatpush.xpose.msra.mxu0 %v415
        %562 = vmatpush.xpose.msra.mxu0 %v412
        %563 = vmatpush.xpose.msra.mxu0 %v409
        %564 = vmatpush.xpose.msra.mxu0 %v406
        %565 = vmatpush.xpose.msra.mxu0 %v403
        %566 = vmatpush.xpose.msra.mxu0 %v400
        %567 = vmatpush.xpose.msra.mxu0 %v397
        %568 = vmatpush.xpose.msra.mxu0 %v394
        %569 = vmatpush.xpose.msra.mxu0 %v391
        %570 = vmatpush.xpose.msra.mxu0 %v388
        %571 = vmatpush.xpose.msra.mxu0 %v385
        %572 = vmatpush.xpose.msra.mxu0 %v382
        %573 = vmatpush.xpose.msra.mxu0 %v379
        %574 = vmatpush.xpose.msra.mxu0 %v376
        %575 = vmatpush.xpose.msra.mxu0 %v373
        %576 = vmatpush.xpose.msra.mxu0 %v370
        %577 = vmatmul.f32.gmra.mxu0 %v367
        %v578 = vpop.f32.mrf.mxu0
        %v579 = vadd.f32 %v287, %v578
        %580 = vdwg.mxu0
        %581 = vmatpush.xpose.msra.mxu0 %v463
        %582 = vmatpush.xpose.msra.mxu0 %v460
        %583 = vmatpush.xpose.msra.mxu0 %v457
        %584 = vmatpush.xpose.msra.mxu0 %v454
        %585 = vmatpush.xpose.msra.mxu0 %v451
        %586 = vmatpush.xpose.msra.mxu0 %v448
        %587 = vmatpush.xpose.msra.mxu0 %v445
        %588 = vmatpush.xpose.msra.mxu0 %v442
        %589 = vmatpush.xpose.msra.mxu0 %v439
        %590 = vmatpush.xpose.msra.mxu0 %v436
        %591 = vmatpush.xpose.msra.mxu0 %v433
        %592 = vmatpush.xpose.msra.mxu0 %v430
        %593 = vmatpush.xpose.msra.mxu0 %v427
        %594 = vmatpush.xpose.msra.mxu0 %v424
        %595 = vmatpush.xpose.msra.mxu0 %v421
        %596 = vmatpush.xpose.msra.mxu0 %v418
        %597 = vmatmul.f32.gmra.mxu0 %v367
        %v598 = vpop.f32.mrf.mxu0
        %v599 = vadd.f32 %v287, %v598
        %600 = vdwg.mxu0
        %601 = vmatpush.xpose.msra.mxu0 %v511
        %602 = vmatpush.xpose.msra.mxu0 %v508
        %603 = vmatpush.xpose.msra.mxu0 %v505
        %604 = vmatpush.xpose.msra.mxu0 %v502
        %605 = vmatpush.xpose.msra.mxu0 %v499
        %606 = vmatpush.xpose.msra.mxu0 %v496
        %607 = vmatpush.xpose.msra.mxu0 %v493
        %608 = vmatpush.xpose.msra.mxu0 %v490
        %609 = vmatpush.xpose.msra.mxu0 %v487
        %610 = vmatpush.xpose.msra.mxu0 %v484
        %611 = vmatpush.xpose.msra.mxu0 %v481
        %612 = vmatpush.xpose.msra.mxu0 %v478
        %613 = vmatpush.xpose.msra.mxu0 %v475
        %614 = vmatpush.xpose.msra.mxu0 %v472
        %615 = vmatpush.xpose.msra.mxu0 %v469
        %616 = vmatpush.xpose.msra.mxu0 %v466
        %617 = vmatmul.f32.gmra.mxu0 %v367
        %v618 = vpop.f32.mrf.mxu0
        %v619 = vadd.f32 %v287, %v618
        %620 = vdwg.mxu0
        %621 = vmatpush.xpose.msra.mxu0 %v559
        %622 = vmatpush.xpose.msra.mxu0 %v556
        %623 = vmatpush.xpose.msra.mxu0 %v553
        %624 = vmatpush.xpose.msra.mxu0 %v550
        %625 = vmatpush.xpose.msra.mxu0 %v547
        %626 = vmatpush.xpose.msra.mxu0 %v544
        %627 = vmatpush.xpose.msra.mxu0 %v541
        %628 = vmatpush.xpose.msra.mxu0 %v538
        %629 = vmatpush.xpose.msra.mxu0 %v535
        %630 = vmatpush.xpose.msra.mxu0 %v532
        %631 = vmatpush.xpose.msra.mxu0 %v529
        %632 = vmatpush.xpose.msra.mxu0 %v526
        %633 = vmatpush.xpose.msra.mxu0 %v523
        %634 = vmatpush.xpose.msra.mxu0 %v520
        %635 = vmatpush.xpose.msra.mxu0 %v517
        %636 = vmatpush.xpose.msra.mxu0 %v514
        %637 = vmatmul.f32.gmra.mxu0 %v367
        %v638 = vpop.f32.mrf.mxu0
        %v639 = vadd.f32 %v287, %v638
        %640 = vdwg.mxu0
        %v641 = vmax.f32 %v579, 0.0
        %v642 = vmax.f32 %v599, 0.0
        %v643 = vmax.f32 %v619, 0.0
        %v644 = vmax.f32 %v639, 0.0
        %vm645 = vcmask 64512
        %v647 = vsel %vm645, %v281, 0
        %649 = vmatpush.msra.mxu0 0.0
        %650 = vmatpush.msra.mxu0 0.0
        %651 = vmatpush.msra.mxu0 0.0
        %652 = vmatpush.msra.mxu0 0.0
        %653 = vmatpush.msra.mxu0 0.0
        %654 = vmatpush.msra.mxu0 0.0
        %655 = vmatpush.msra.mxu0 0.0
        %656 = vmatpush.msra.mxu0 0.0
        %657 = vmatpush.msra.mxu0 0.0
        %658 = vmatpush.msra.mxu0 0.0
        %659 = vmatpush.msra.mxu0 0.0
        %660 = vmatpush.msra.mxu0 0.0
        %661 = vmatpush.msra.mxu0 0.0
        %662 = vmatpush.msra.mxu0 0.0
        %663 = vmatpush.msra.mxu0 0.0
        %664 = vmatpush.msra.mxu0 %v641
        %665 = vmatmul.f32.gmra.mxu0 %v647
        %v666 = vpop.f32.mrf.mxu0
        %v667 = vadd.f32 %v293, %v666
        %668 = vdwg.mxu0
        %669 = vmatpush.msra.mxu0 0.0
        %670 = vmatpush.msra.mxu0 0.0
        %671 = vmatpush.msra.mxu0 0.0
        %672 = vmatpush.msra.mxu0 0.0
        %673 = vmatpush.msra.mxu0 0.0
        %674 = vmatpush.msra.mxu0 0.0
        %675 = vmatpush.msra.mxu0 0.0
        %676 = vmatpush.msra.mxu0 0.0
        %677 = vmatpush.msra.mxu0 0.0
        %678 = vmatpush.msra.mxu0 0.0
        %679 = vmatpush.msra.mxu0 0.0
        %680 = vmatpush.msra.mxu0 0.0
        %681 = vmatpush.msra.mxu0 0.0
        %682 = vmatpush.msra.mxu0 0.0
        %683 = vmatpush.msra.mxu0 0.0
        %684 = vmatpush.msra.mxu0 %v642
        %685 = vmatmul.f32.gmra.mxu0 %v647
        %v686 = vpop.f32.mrf.mxu0
        %v687 = vadd.f32 %v293, %v686
        %688 = vdwg.mxu0
        %689 = vmatpush.msra.mxu0 0.0
        %690 = vmatpush.msra.mxu0 0.0
        %691 = vmatpush.msra.mxu0 0.0
        %692 = vmatpush.msra.mxu0 0.0
        %693 = vmatpush.msra.mxu0 0.0
        %694 = vmatpush.msra.mxu0 0.0
        %695 = vmatpush.msra.mxu0 0.0
        %696 = vmatpush.msra.mxu0 0.0
        %697 = vmatpush.msra.mxu0 0.0
        %698 = vmatpush.msra.mxu0 0.0
        %699 = vmatpush.msra.mxu0 0.0
        %700 = vmatpush.msra.mxu0 0.0
        %701 = vmatpush.msra.mxu0 0.0
        %702 = vmatpush.msra.mxu0 0.0
        %703 = vmatpush.msra.mxu0 0.0
        %704 = vmatpush.msra.mxu0 %v643
        %705 = vmatmul.f32.gmra.mxu0 %v647
        %v706 = vpop.f32.mrf.mxu0
        %v707 = vadd.f32 %v293, %v706
        %708 = vdwg.mxu0
        %709 = vmatpush.msra.mxu0 0.0
        %710 = vmatpush.msra.mxu0 0.0
        %711 = vmatpush.msra.mxu0 0.0
        %712 = vmatpush.msra.mxu0 0.0
        %713 = vmatpush.msra.mxu0 0.0
        %714 = vmatpush.msra.mxu0 0.0
        %715 = vmatpush.msra.mxu0 0.0
        %716 = vmatpush.msra.mxu0 0.0
        %717 = vmatpush.msra.mxu0 0.0
        %718 = vmatpush.msra.mxu0 0.0
        %719 = vmatpush.msra.mxu0 0.0
        %720 = vmatpush.msra.mxu0 0.0
        %721 = vmatpush.msra.mxu0 0.0
        %722 = vmatpush.msra.mxu0 0.0
        %723 = vmatpush.msra.mxu0 0.0
        %724 = vmatpush.msra.mxu0 %v644
        %725 = vmatmul.f32.gmra.mxu0 %v647
        %v726 = vpop.f32.mrf.mxu0
        %v727 = vadd.f32 %v293, %v726
        %728 = vdwg.mxu0
        %v729 = vmax.f32 %v667, 0.0
        %v730 = vmax.f32 %v687, 0.0
        %v731 = vmax.f32 %v707, 0.0
        %v732 = vmax.f32 %v727, 0.0
        %v734 = vsel %vm645, %v282, 0
        %736 = vmatpush.msra.mxu0 0.0
        %737 = vmatpush.msra.mxu0 0.0
        %738 = vmatpush.msra.mxu0 0.0
        %739 = vmatpush.msra.mxu0 0.0
        %740 = vmatpush.msra.mxu0 0.0
        %741 = vmatpush.msra.mxu0 0.0
        %742 = vmatpush.msra.mxu0 0.0
        %743 = vmatpush.msra.mxu0 0.0
        %744 = vmatpush.msra.mxu0 0.0
        %745 = vmatpush.msra.mxu0 0.0
        %746 = vmatpush.msra.mxu0 0.0
        %747 = vmatpush.msra.mxu0 0.0
        %748 = vmatpush.msra.mxu0 0.0
        %749 = vmatpush.msra.mxu0 0.0
        %750 = vmatpush.msra.mxu0 0.0
        %751 = vmatpush.msra.mxu0 %v729
        %752 = vmatmul.f32.gmra.mxu0 %v734
        %v753 = vpop.f32.mrf.mxu0
        %v754 = vadd.f32 %v299, %v753
        %755 = vdwg.mxu0
        %756 = vmatpush.msra.mxu0 0.0
        %757 = vmatpush.msra.mxu0 0.0
        %758 = vmatpush.msra.mxu0 0.0
        %759 = vmatpush.msra.mxu0 0.0
        %760 = vmatpush.msra.mxu0 0.0
        %761 = vmatpush.msra.mxu0 0.0
        %762 = vmatpush.msra.mxu0 0.0
        %763 = vmatpush.msra.mxu0 0.0
        %764 = vmatpush.msra.mxu0 0.0
        %765 = vmatpush.msra.mxu0 0.0
        %766 = vmatpush.msra.mxu0 0.0
        %767 = vmatpush.msra.mxu0 0.0
        %768 = vmatpush.msra.mxu0 0.0
        %769 = vmatpush.msra.mxu0 0.0
        %770 = vmatpush.msra.mxu0 0.0
        %771 = vmatpush.msra.mxu0 %v730
        %772 = vmatmul.f32.gmra.mxu0 %v734
        %v773 = vpop.f32.mrf.mxu0
        %v774 = vadd.f32 %v299, %v773
        %775 = vdwg.mxu0
        %776 = vmatpush.msra.mxu0 0.0
        %777 = vmatpush.msra.mxu0 0.0
        %778 = vmatpush.msra.mxu0 0.0
        %779 = vmatpush.msra.mxu0 0.0
        %780 = vmatpush.msra.mxu0 0.0
        %781 = vmatpush.msra.mxu0 0.0
        %782 = vmatpush.msra.mxu0 0.0
        %783 = vmatpush.msra.mxu0 0.0
        %784 = vmatpush.msra.mxu0 0.0
        %785 = vmatpush.msra.mxu0 0.0
        %786 = vmatpush.msra.mxu0 0.0
        %787 = vmatpush.msra.mxu0 0.0
        %788 = vmatpush.msra.mxu0 0.0
        %789 = vmatpush.msra.mxu0 0.0
        %790 = vmatpush.msra.mxu0 0.0
        %791 = vmatpush.msra.mxu0 %v731
        %792 = vmatmul.f32.gmra.mxu0 %v734
        %v793 = vpop.f32.mrf.mxu0
        %v794 = vadd.f32 %v299, %v793
        %795 = vdwg.mxu0
        %796 = vmatpush.msra.mxu0 0.0
        %797 = vmatpush.msra.mxu0 0.0
        %798 = vmatpush.msra.mxu0 0.0
        %799 = vmatpush.msra.mxu0 0.0
        %800 = vmatpush.msra.mxu0 0.0
        %801 = vmatpush.msra.mxu0 0.0
        %802 = vmatpush.msra.mxu0 0.0
        %803 = vmatpush.msra.mxu0 0.0
        %804 = vmatpush.msra.mxu0 0.0
        %805 = vmatpush.msra.mxu0 0.0
        %806 = vmatpush.msra.mxu0 0.0
        %807 = vmatpush.msra.mxu0 0.0
        %808 = vmatpush.msra.mxu0 0.0
        %809 = vmatpush.msra.mxu0 0.0
        %810 = vmatpush.msra.mxu0 0.0
        %811 = vmatpush.msra.mxu0 %v732
        %812 = vmatmul.f32.gmra.mxu0 %v734
        %v813 = vpop.f32.mrf.mxu0
        %v814 = vadd.f32 %v299, %v813
        %815 = vdwg.mxu0
        %v816 = vmax.f32 %v754, 0.0
        %v817 = vmax.f32 %v774, 0.0
        %v818 = vmax.f32 %v794, 0.0
        %v819 = vmax.f32 %v814, 0.0
        %v824 = vrot.slane %v817, 6
        %v825 = vrot.slane %v818, 4
        %v826 = vrot.slane %v819, 2
        %vm827 = vcmask 1041408
        %v828 = vsel %vm827, %v816, %v824
        %vm829 = vcmask 1045508
        %v830 = vsel %vm829, %v825, %v826
        %vm831 = vcmask 1043456
        %v832 = vsel %vm831, %v828, %v830
        %834 = vst [vmem:[%s272] sm:$0xff] %v832
        %s835 = scalar_lea.vmem %s277, 512
        %v836 = vld [vmem:[%s835] sm:$0xff]
        %v837 = vld [vmem:[%s835 + $0x8] sm:$0xff]
        %v838 = vld [vmem:[%s835 + $0x10] sm:$0xff]
        %v839 = vld [vmem:[%s835 + $0x18] sm:$0xff]
        %v840 = vld [vmem:[%s835 + $0x20] sm:$0xff]
        %v841 = vld [vmem:[%s835 + $0x28] sm:$0xff]
        %v842 = vld [vmem:[%s835 + $0x30] sm:$0xff]
        %v843 = vld [vmem:[%s835 + $0x38] sm:$0xff]
        %v844 = vld [vmem:[%s835 + $0x40] sm:$0xff]
        %v845 = vld [vmem:[%s835 + $0x48] sm:$0xff]
        %v846 = vld [vmem:[%s835 + $0x50] sm:$0xff]
        %v847 = vld [vmem:[%s835 + $0x58] sm:$0xff]
        %v848 = vld [vmem:[%s835 + $0x60] sm:$0xff]
        %v849 = vld [vmem:[%s835 + $0x68] sm:$0xff]
        %v850 = vld [vmem:[%s835 + $0x70] sm:$0xff]
        %v851 = vld [vmem:[%s835 + $0x78] sm:$0xff]
        %v852 = vld [vmem:[%s835 + $0x80] sm:$0xff]
        %v853 = vld [vmem:[%s835 + $0x88] sm:$0xff]
        %v854 = vld [vmem:[%s835 + $0x90] sm:$0xff]
        %v855 = vld [vmem:[%s835 + $0x98] sm:$0xff]
        %v856 = vld [vmem:[%s835 + $0xa0] sm:$0xff]
        %v857 = vld [vmem:[%s835 + $0xa8] sm:$0xff]
        %v858 = vld [vmem:[%s835 + $0xb0] sm:$0xff]
        %v859 = vld [vmem:[%s835 + $0xb8] sm:$0xff]
        %v860 = vld [vmem:[%s835 + $0xc0] sm:$0xff]
        %v861 = vld [vmem:[%s835 + $0xc8] sm:$0xff]
        %v862 = vld [vmem:[%s835 + $0xd0] sm:$0xff]
        %v863 = vld [vmem:[%s835 + $0xd8] sm:$0xff]
        %v864 = vld [vmem:[%s835 + $0xe0] sm:$0xff]
        %v865 = vld [vmem:[%s835 + $0xe8] sm:$0xff]
        %v866 = vld [vmem:[%s835 + $0xf0] sm:$0xff]
        %v867 = vld [vmem:[%s835 + $0xf8] sm:$0xff]
        %v868 = vld [vmem:[%s835 + $0x100] sm:$0xff]
        %v869 = vld [vmem:[%s835 + $0x108] sm:$0xff]
        %v870 = vld [vmem:[%s835 + $0x110] sm:$0xff]
        %v871 = vld [vmem:[%s835 + $0x118] sm:$0xff]
        %v872 = vld [vmem:[%s835 + $0x120] sm:$0xff]
        %v873 = vld [vmem:[%s835 + $0x128] sm:$0xff]
        %v874 = vld [vmem:[%s835 + $0x130] sm:$0xff]
        %v875 = vld [vmem:[%s835 + $0x138] sm:$0xff]
        %v876 = vld [vmem:[%s835 + $0x140] sm:$0xff]
        %v877 = vld [vmem:[%s835 + $0x148] sm:$0xff]
        %v878 = vld [vmem:[%s835 + $0x150] sm:$0xff]
        %v879 = vld [vmem:[%s835 + $0x158] sm:$0xff]
        %v880 = vld [vmem:[%s835 + $0x160] sm:$0xff]
        %v881 = vld [vmem:[%s835 + $0x168] sm:$0xff]
        %v882 = vld [vmem:[%s835 + $0x170] sm:$0xff]
        %v883 = vld [vmem:[%s835 + $0x178] sm:$0xff]
        %v884 = vld [vmem:[%s835 + $0x180] sm:$0xff]
        %v885 = vld [vmem:[%s835 + $0x188] sm:$0xff]
        %v886 = vld [vmem:[%s835 + $0x190] sm:$0xff]
        %v887 = vld [vmem:[%s835 + $0x198] sm:$0xff]
        %v888 = vld [vmem:[%s835 + $0x1a0] sm:$0xff]
        %v889 = vld [vmem:[%s835 + $0x1a8] sm:$0xff]
        %v890 = vld [vmem:[%s835 + $0x1b0] sm:$0xff]
        %v891 = vld [vmem:[%s835 + $0x1b8] sm:$0xff]
        %v892 = vld [vmem:[%s835 + $0x1c0] sm:$0xff]
        %v893 = vld [vmem:[%s835 + $0x1c8] sm:$0xff]
        %v894 = vld [vmem:[%s835 + $0x1d0] sm:$0xff]
        %v895 = vld [vmem:[%s835 + $0x1d8] sm:$0xff]
        %v896 = vld [vmem:[%s835 + $0x1e0] sm:$0xff]
        %v897 = vld [vmem:[%s835 + $0x1e8] sm:$0xff]
        %v898 = vld [vmem:[%s835 + $0x1f0] sm:$0xff]
        %v899 = vld [vmem:[%s835 + $0x1f8] sm:$0xff]
        %v901 = vsel %vm365, %v836, 0
        %v904 = vsel %vm365, %v837, 0
        %v907 = vsel %vm365, %v838, 0
        %v910 = vsel %vm365, %v839, 0
        %v913 = vsel %vm365, %v840, 0
        %v916 = vsel %vm365, %v841, 0
        %v919 = vsel %vm365, %v842, 0
        %v922 = vsel %vm365, %v843, 0
        %v925 = vsel %vm365, %v844, 0
        %v928 = vsel %vm365, %v845, 0
        %v931 = vsel %vm365, %v846, 0
        %v934 = vsel %vm365, %v847, 0
        %v937 = vsel %vm365, %v848, 0
        %v940 = vsel %vm365, %v849, 0
        %v943 = vsel %vm365, %v850, 0
        %v946 = vsel %vm365, %v851, 0
        %v949 = vsel %vm365, %v852, 0
        %v952 = vsel %vm365, %v853, 0
        %v955 = vsel %vm365, %v854, 0
        %v958 = vsel %vm365, %v855, 0
        %v961 = vsel %vm365, %v856, 0
        %v964 = vsel %vm365, %v857, 0
        %v967 = vsel %vm365, %v858, 0
        %v970 = vsel %vm365, %v859, 0
        %v973 = vsel %vm365, %v860, 0
        %v976 = vsel %vm365, %v861, 0
        %v979 = vsel %vm365, %v862, 0
        %v982 = vsel %vm365, %v863, 0
        %v985 = vsel %vm365, %v864, 0
        %v988 = vsel %vm365, %v865, 0
        %v991 = vsel %vm365, %v866, 0
        %v994 = vsel %vm365, %v867, 0
        %v997 = vsel %vm365, %v868, 0
        %v1000 = vsel %vm365, %v869, 0
        %v1003 = vsel %vm365, %v870, 0
        %v1006 = vsel %vm365, %v871, 0
        %v1009 = vsel %vm365, %v872, 0
        %v1012 = vsel %vm365, %v873, 0
        %v1015 = vsel %vm365, %v874, 0
        %v1018 = vsel %vm365, %v875, 0
        %v1021 = vsel %vm365, %v876, 0
        %v1024 = vsel %vm365, %v877, 0
        %v1027 = vsel %vm365, %v878, 0
        %v1030 = vsel %vm365, %v879, 0
        %v1033 = vsel %vm365, %v880, 0
        %v1036 = vsel %vm365, %v881, 0
        %v1039 = vsel %vm365, %v882, 0
        %v1042 = vsel %vm365, %v883, 0
        %v1045 = vsel %vm365, %v884, 0
        %v1048 = vsel %vm365, %v885, 0
        %v1051 = vsel %vm365, %v886, 0
        %v1054 = vsel %vm365, %v887, 0
        %v1057 = vsel %vm365, %v888, 0
        %v1060 = vsel %vm365, %v889, 0
        %v1063 = vsel %vm365, %v890, 0
        %v1066 = vsel %vm365, %v891, 0
        %v1069 = vsel %vm365, %v892, 0
        %v1072 = vsel %vm365, %v893, 0
        %v1075 = vsel %vm365, %v894, 0
        %v1078 = vsel %vm365, %v895, 0
        %v1081 = vsel %vm365, %v896, 0
        %v1084 = vsel %vm365, %v897, 0
        %v1087 = vsel %vm365, %v898, 0
        %v1090 = vsel %vm365, %v899, 0
        %1092 = vmatpush.xpose.msra.mxu0 %v946
        %1093 = vmatpush.xpose.msra.mxu0 %v943
        %1094 = vmatpush.xpose.msra.mxu0 %v940
        %1095 = vmatpush.xpose.msra.mxu0 %v937
        %1096 = vmatpush.xpose.msra.mxu0 %v934
        %1097 = vmatpush.xpose.msra.mxu0 %v931
        %1098 = vmatpush.xpose.msra.mxu0 %v928
        %1099 = vmatpush.xpose.msra.mxu0 %v925
        %1100 = vmatpush.xpose.msra.mxu0 %v922
        %1101 = vmatpush.xpose.msra.mxu0 %v919
        %1102 = vmatpush.xpose.msra.mxu0 %v916
        %1103 = vmatpush.xpose.msra.mxu0 %v913
        %1104 = vmatpush.xpose.msra.mxu0 %v910
        %1105 = vmatpush.xpose.msra.mxu0 %v907
        %1106 = vmatpush.xpose.msra.mxu0 %v904
        %1107 = vmatpush.xpose.msra.mxu0 %v901
        %1108 = vmatmul.f32.gmra.mxu0 %v367
        %v1109 = vpop.f32.mrf.mxu0
        %v1110 = vadd.f32 %v287, %v1109
        %1111 = vdwg.mxu0
        %1112 = vmatpush.xpose.msra.mxu0 %v994
        %1113 = vmatpush.xpose.msra.mxu0 %v991
        %1114 = vmatpush.xpose.msra.mxu0 %v988
        %1115 = vmatpush.xpose.msra.mxu0 %v985
        %1116 = vmatpush.xpose.msra.mxu0 %v982
        %1117 = vmatpush.xpose.msra.mxu0 %v979
        %1118 = vmatpush.xpose.msra.mxu0 %v976
        %1119 = vmatpush.xpose.msra.mxu0 %v973
        %1120 = vmatpush.xpose.msra.mxu0 %v970
        %1121 = vmatpush.xpose.msra.mxu0 %v967
        %1122 = vmatpush.xpose.msra.mxu0 %v964
        %1123 = vmatpush.xpose.msra.mxu0 %v961
        %1124 = vmatpush.xpose.msra.mxu0 %v958
        %1125 = vmatpush.xpose.msra.mxu0 %v955
        %1126 = vmatpush.xpose.msra.mxu0 %v952
        %1127 = vmatpush.xpose.msra.mxu0 %v949
        %1128 = vmatmul.f32.gmra.mxu0 %v367
        %v1129 = vpop.f32.mrf.mxu0
        %v1130 = vadd.f32 %v287, %v1129
        %1131 = vdwg.mxu0
        %1132 = vmatpush.xpose.msra.mxu0 %v1042
        %1133 = vmatpush.xpose.msra.mxu0 %v1039
        %1134 = vmatpush.xpose.msra.mxu0 %v1036
        %1135 = vmatpush.xpose.msra.mxu0 %v1033
        %1136 = vmatpush.xpose.msra.mxu0 %v1030
        %1137 = vmatpush.xpose.msra.mxu0 %v1027
        %1138 = vmatpush.xpose.msra.mxu0 %v1024
        %1139 = vmatpush.xpose.msra.mxu0 %v1021
        %1140 = vmatpush.xpose.msra.mxu0 %v1018
        %1141 = vmatpush.xpose.msra.mxu0 %v1015
        %1142 = vmatpush.xpose.msra.mxu0 %v1012
        %1143 = vmatpush.xpose.msra.mxu0 %v1009
        %1144 = vmatpush.xpose.msra.mxu0 %v1006
        %1145 = vmatpush.xpose.msra.mxu0 %v1003
        %1146 = vmatpush.xpose.msra.mxu0 %v1000
        %1147 = vmatpush.xpose.msra.mxu0 %v997
        %1148 = vmatmul.f32.gmra.mxu0 %v367
        %v1149 = vpop.f32.mrf.mxu0
        %v1150 = vadd.f32 %v287, %v1149
        %1151 = vdwg.mxu0
        %1152 = vmatpush.xpose.msra.mxu0 %v1090
        %1153 = vmatpush.xpose.msra.mxu0 %v1087
        %1154 = vmatpush.xpose.msra.mxu0 %v1084
        %1155 = vmatpush.xpose.msra.mxu0 %v1081
        %1156 = vmatpush.xpose.msra.mxu0 %v1078
        %1157 = vmatpush.xpose.msra.mxu0 %v1075
        %1158 = vmatpush.xpose.msra.mxu0 %v1072
        %1159 = vmatpush.xpose.msra.mxu0 %v1069
        %1160 = vmatpush.xpose.msra.mxu0 %v1066
        %1161 = vmatpush.xpose.msra.mxu0 %v1063
        %1162 = vmatpush.xpose.msra.mxu0 %v1060
        %1163 = vmatpush.xpose.msra.mxu0 %v1057
        %1164 = vmatpush.xpose.msra.mxu0 %v1054
        %1165 = vmatpush.xpose.msra.mxu0 %v1051
        %1166 = vmatpush.xpose.msra.mxu0 %v1048
        %1167 = vmatpush.xpose.msra.mxu0 %v1045
        %1168 = vmatmul.f32.gmra.mxu0 %v367
        %v1169 = vpop.f32.mrf.mxu0
        %v1170 = vadd.f32 %v287, %v1169
        %1171 = vdwg.mxu0
        %v1172 = vmax.f32 %v1110, 0.0
        %v1173 = vmax.f32 %v1130, 0.0
        %v1174 = vmax.f32 %v1150, 0.0
        %v1175 = vmax.f32 %v1170, 0.0
        %1176 = vmatpush.msra.mxu0 0.0
        %1177 = vmatpush.msra.mxu0 0.0
        %1178 = vmatpush.msra.mxu0 0.0
        %1179 = vmatpush.msra.mxu0 0.0
        %1180 = vmatpush.msra.mxu0 0.0
        %1181 = vmatpush.msra.mxu0 0.0
        %1182 = vmatpush.msra.mxu0 0.0
        %1183 = vmatpush.msra.mxu0 0.0
        %1184 = vmatpush.msra.mxu0 0.0
        %1185 = vmatpush.msra.mxu0 0.0
        %1186 = vmatpush.msra.mxu0 0.0
        %1187 = vmatpush.msra.mxu0 0.0
        %1188 = vmatpush.msra.mxu0 0.0
        %1189 = vmatpush.msra.mxu0 0.0
        %1190 = vmatpush.msra.mxu0 0.0
        %1191 = vmatpush.msra.mxu0 %v1172
        %1192 = vmatmul.f32.gmra.mxu0 %v647
        %v1193 = vpop.f32.mrf.mxu0
        %v1194 = vadd.f32 %v293, %v1193
        %1195 = vdwg.mxu0
        %1196 = vmatpush.msra.mxu0 0.0
        %1197 = vmatpush.msra.mxu0 0.0
        %1198 = vmatpush.msra.mxu0 0.0
        %1199 = vmatpush.msra.mxu0 0.0
        %1200 = vmatpush.msra.mxu0 0.0
        %1201 = vmatpush.msra.mxu0 0.0
        %1202 = vmatpush.msra.mxu0 0.0
        %1203 = vmatpush.msra.mxu0 0.0
        %1204 = vmatpush.msra.mxu0 0.0
        %1205 = vmatpush.msra.mxu0 0.0
        %1206 = vmatpush.msra.mxu0 0.0
        %1207 = vmatpush.msra.mxu0 0.0
        %1208 = vmatpush.msra.mxu0 0.0
        %1209 = vmatpush.msra.mxu0 0.0
        %1210 = vmatpush.msra.mxu0 0.0
        %1211 = vmatpush.msra.mxu0 %v1173
        %1212 = vmatmul.f32.gmra.mxu0 %v647
        %v1213 = vpop.f32.mrf.mxu0
        %v1214 = vadd.f32 %v293, %v1213
        %1215 = vdwg.mxu0
        %1216 = vmatpush.msra.mxu0 0.0
        %1217 = vmatpush.msra.mxu0 0.0
        %1218 = vmatpush.msra.mxu0 0.0
        %1219 = vmatpush.msra.mxu0 0.0
        %1220 = vmatpush.msra.mxu0 0.0
        %1221 = vmatpush.msra.mxu0 0.0
        %1222 = vmatpush.msra.mxu0 0.0
        %1223 = vmatpush.msra.mxu0 0.0
        %1224 = vmatpush.msra.mxu0 0.0
        %1225 = vmatpush.msra.mxu0 0.0
        %1226 = vmatpush.msra.mxu0 0.0
        %1227 = vmatpush.msra.mxu0 0.0
        %1228 = vmatpush.msra.mxu0 0.0
        %1229 = vmatpush.msra.mxu0 0.0
        %1230 = vmatpush.msra.mxu0 0.0
        %1231 = vmatpush.msra.mxu0 %v1174
        %1232 = vmatmul.f32.gmra.mxu0 %v647
        %v1233 = vpop.f32.mrf.mxu0
        %v1234 = vadd.f32 %v293, %v1233
        %1235 = vdwg.mxu0
        %1236 = vmatpush.msra.mxu0 0.0
        %1237 = vmatpush.msra.mxu0 0.0
        %1238 = vmatpush.msra.mxu0 0.0
        %1239 = vmatpush.msra.mxu0 0.0
        %1240 = vmatpush.msra.mxu0 0.0
        %1241 = vmatpush.msra.mxu0 0.0
        %1242 = vmatpush.msra.mxu0 0.0
        %1243 = vmatpush.msra.mxu0 0.0
        %1244 = vmatpush.msra.mxu0 0.0
        %1245 = vmatpush.msra.mxu0 0.0
        %1246 = vmatpush.msra.mxu0 0.0
        %1247 = vmatpush.msra.mxu0 0.0
        %1248 = vmatpush.msra.mxu0 0.0
        %1249 = vmatpush.msra.mxu0 0.0
        %1250 = vmatpush.msra.mxu0 0.0
        %1251 = vmatpush.msra.mxu0 %v1175
        %1252 = vmatmul.f32.gmra.mxu0 %v647
        %v1253 = vpop.f32.mrf.mxu0
        %v1254 = vadd.f32 %v293, %v1253
        %1255 = vdwg.mxu0
        %v1256 = vmax.f32 %v1194, 0.0
        %v1257 = vmax.f32 %v1214, 0.0
        %v1258 = vmax.f32 %v1234, 0.0
        %v1259 = vmax.f32 %v1254, 0.0
        %1260 = vmatpush.msra.mxu0 0.0
        %1261 = vmatpush.msra.mxu0 0.0
        %1262 = vmatpush.msra.mxu0 0.0
        %1263 = vmatpush.msra.mxu0 0.0
        %1264 = vmatpush.msra.mxu0 0.0
        %1265 = vmatpush.msra.mxu0 0.0
        %1266 = vmatpush.msra.mxu0 0.0
        %1267 = vmatpush.msra.mxu0 0.0
        %1268 = vmatpush.msra.mxu0 0.0
        %1269 = vmatpush.msra.mxu0 0.0
        %1270 = vmatpush.msra.mxu0 0.0
        %1271 = vmatpush.msra.mxu0 0.0
        %1272 = vmatpush.msra.mxu0 0.0
        %1273 = vmatpush.msra.mxu0 0.0
        %1274 = vmatpush.msra.mxu0 0.0
        %1275 = vmatpush.msra.mxu0 %v1256
        %1276 = vmatmul.f32.gmra.mxu0 %v734
        %v1277 = vpop.f32.mrf.mxu0
        %v1278 = vadd.f32 %v299, %v1277
        %1279 = vdwg.mxu0
        %1280 = vmatpush.msra.mxu0 0.0
        %1281 = vmatpush.msra.mxu0 0.0
        %1282 = vmatpush.msra.mxu0 0.0
        %1283 = vmatpush.msra.mxu0 0.0
        %1284 = vmatpush.msra.mxu0 0.0
        %1285 = vmatpush.msra.mxu0 0.0
        %1286 = vmatpush.msra.mxu0 0.0
        %1287 = vmatpush.msra.mxu0 0.0
        %1288 = vmatpush.msra.mxu0 0.0
        %1289 = vmatpush.msra.mxu0 0.0
        %1290 = vmatpush.msra.mxu0 0.0
        %1291 = vmatpush.msra.mxu0 0.0
        %1292 = vmatpush.msra.mxu0 0.0
        %1293 = vmatpush.msra.mxu0 0.0
        %1294 = vmatpush.msra.mxu0 0.0
        %1295 = vmatpush.msra.mxu0 %v1257
        %1296 = vmatmul.f32.gmra.mxu0 %v734
        %v1297 = vpop.f32.mrf.mxu0
        %v1298 = vadd.f32 %v299, %v1297
        %1299 = vdwg.mxu0
        %1300 = vmatpush.msra.mxu0 0.0
        %1301 = vmatpush.msra.mxu0 0.0
        %1302 = vmatpush.msra.mxu0 0.0
        %1303 = vmatpush.msra.mxu0 0.0
        %1304 = vmatpush.msra.mxu0 0.0
        %1305 = vmatpush.msra.mxu0 0.0
        %1306 = vmatpush.msra.mxu0 0.0
        %1307 = vmatpush.msra.mxu0 0.0
        %1308 = vmatpush.msra.mxu0 0.0
        %1309 = vmatpush.msra.mxu0 0.0
        %1310 = vmatpush.msra.mxu0 0.0
        %1311 = vmatpush.msra.mxu0 0.0
        %1312 = vmatpush.msra.mxu0 0.0
        %1313 = vmatpush.msra.mxu0 0.0
        %1314 = vmatpush.msra.mxu0 0.0
        %1315 = vmatpush.msra.mxu0 %v1258
        %1316 = vmatmul.f32.gmra.mxu0 %v734
        %v1317 = vpop.f32.mrf.mxu0
        %v1318 = vadd.f32 %v299, %v1317
        %1319 = vdwg.mxu0
        %1320 = vmatpush.msra.mxu0 0.0
        %1321 = vmatpush.msra.mxu0 0.0
        %1322 = vmatpush.msra.mxu0 0.0
        %1323 = vmatpush.msra.mxu0 0.0
        %1324 = vmatpush.msra.mxu0 0.0
        %1325 = vmatpush.msra.mxu0 0.0
        %1326 = vmatpush.msra.mxu0 0.0
        %1327 = vmatpush.msra.mxu0 0.0
        %1328 = vmatpush.msra.mxu0 0.0
        %1329 = vmatpush.msra.mxu0 0.0
        %1330 = vmatpush.msra.mxu0 0.0
        %1331 = vmatpush.msra.mxu0 0.0
        %1332 = vmatpush.msra.mxu0 0.0
        %1333 = vmatpush.msra.mxu0 0.0
        %1334 = vmatpush.msra.mxu0 0.0
        %1335 = vmatpush.msra.mxu0 %v1259
        %1336 = vmatmul.f32.gmra.mxu0 %v734
        %v1337 = vpop.f32.mrf.mxu0
        %v1338 = vadd.f32 %v299, %v1337
        %1339 = vdwg.mxu0
        %v1340 = vmax.f32 %v1278, 0.0
        %v1341 = vmax.f32 %v1298, 0.0
        %v1342 = vmax.f32 %v1318, 0.0
        %v1343 = vmax.f32 %v1338, 0.0
        %v1348 = vrot.slane %v1341, 6
        %v1349 = vrot.slane %v1342, 4
        %v1350 = vrot.slane %v1343, 2
        %v1351 = vsel %vm827, %v1340, %v1348
        %v1352 = vsel %vm829, %v1349, %v1350
        %v1353 = vsel %vm831, %v1351, %v1352
        %s1355 = scalar_lea.vmem %s272, 8 [#allocation2]
        %1356 = vst [vmem:[%s1355] sm:$0xff] %v1353
        %s1357 = sand.u32 %s181, 1
        %s1358 = scalar_lea.sflag [#allocation3], %s1357
        %s1359 = sand.u32 %s181, 1
        %s1360 = smul.addr %s1359, 16
        %s1361 = scalar_lea.vmem [#allocation2], %s1360
        // Predicated region
        $region49: #{tpu_custom_call.1} parent=47 // pred_check
          %p1362 = pneg %p191
        $region50: #{tpu_custom_call.1} parent=47 // pred_check_branch
          %1364 = sbr.rel (%p1362) target = $region52
        $region51: #{tpu_custom_call.1} parent=47 // pred_region
          %s1365 = smul.u32 8, %s21
          %1367 = vsyncadd %s1358, 0
          %s1368 = smul.addr %s1365, 2
          %s1369 = scalar_lea.hbm %s7, %s1368
          %s1371 = sshll.u32 %s1361, 4
          %s1372 = int_to_ptr.vmem [resolvable:$true] %s1371
          %s1373 = sshll.u32 %s1369, 4
          %s1374 = int_to_ptr.hbm [resolvable:$true] %s1373
          %1376 = dma.vmem_to_hbm [thread:$0]  %s1372, 256, %s1374, %s1358
        $region52: #{tpu_custom_call.1} parent=47 // pred_fallthru
          _
      $region48: #{tpu_custom_call.1} parent=5 // pred_fallthru
        _
      %p1377 = scmp.le.s32.totalorder 2, %s16
      // Predicated region
      $region53: #{tpu_custom_call.1} parent=5 // pred_check
        %p1378 = pneg %p1377
      $region54: #{tpu_custom_call.1} parent=5 // pred_check_branch
        %1380 = sbr.rel (%p1378) target = $region56
      $region55: #{tpu_custom_call.1} parent=5 // pred_region
        %s1381 = ssub.s32 %s16, 2
        // Predicated region
        $region57: #{tpu_custom_call.1} parent=55 // pred_check
          %p1382 = pneg %p197
        $region58: #{tpu_custom_call.1} parent=55 // pred_check_branch
          %1384 = sbr.rel (%p1382) target = $region60
        $region59: #{tpu_custom_call.1} parent=55 // pred_region
          %s1385 = sand.u32 %s182, 1
          %s1386 = scalar_lea.sflag [#allocation3], %s1385
          %s1387 = sand.u32 %s182, 1
          %s1388 = smul.addr %s1387, 16
          %s1389 = scalar_lea.vmem [#allocation2], %s1388
          %1391 = dma.done %s1386, 256
        $region60: #{tpu_custom_call.1} parent=55 // pred_fallthru
          _
      $region56: #{tpu_custom_call.1} parent=5 // pred_fallthru
        _
    $region6: #{tpu_custom_call.1} parent=1 // loop_footer
      %s20 = sadd.s32 1, %s16
    $region7: #{tpu_custom_call.1} parent=1 // loop_footer_branch
      %15 = sbr.rel target = $region3
    $region8: #{tpu_custom_call.1} parent=1 // loop_exit
      _
    %1392 = vsyncpa [#allocation3], 1
    %s1393 = scalar_lea.sflag [#allocation3], 1
    %1394 = vsyncpa %s1393, 1

</llo_original>
